<compile_context>
chip_gen: v6e
topology: v6e:2x2x1
jax: 0.10.0
libtpu: 0.0.40
codegen_flags: <defaults>
</compile_context>

<pallas_src>
import functools
from typing import NamedTuple

import jax
import jax.numpy as jnp
from jax.experimental import pallas as pl
from jax.experimental.pallas import tpu as pltpu


def _round_up(n, m):
    return ((n + m - 1) // m) * m


def _vmem_budget_bytes():
    """Per-generation VMEM request cap (75% of physical; 48 MiB on v7x)."""
    cap = 64 * 1024 * 1024  # conservative default = v7x physical VMEM
    try:
        info = pltpu.get_tpu_info()
        cap = int(getattr(info, "vmem_capacity_bytes", cap))
    except Exception:
        pass
    return (3 * cap) // 4


# ----------------------------------------------------------------------------
# Kernel 1: base-model forward (Linear -> ReLU -> Linear), fully fused.
# ----------------------------------------------------------------------------
def _mlp_forward_kernel(x_ref, w1_ref, b1_ref, w2_ref, b2_ref, o_ref, *, mxu_dtype):
    x = x_ref[...]
    w1 = w1_ref[...]
    if mxu_dtype is not None:
        x = x.astype(mxu_dtype)
        w1 = w1.astype(mxu_dtype)
    h = jnp.dot(x, w1, preferred_element_type=jnp.float32) + b1_ref[...]
    h = jnp.maximum(h, 0.0)                                   # ReLU on VPU
    w2 = w2_ref[...]
    if mxu_dtype is not None:
        h = h.astype(mxu_dtype)
        w2 = w2.astype(mxu_dtype)
    o = jnp.dot(h, w2, preferred_element_type=jnp.float32) + b2_ref[...]
    o_ref[...] = o.astype(o_ref.dtype)


class PackedMLP(NamedTuple):
    w1p: jax.Array   # (Dip, Hp)  lane/sublane-dense, zero padded
    b1p: jax.Array   # (1, Hp)
    w2p: jax.Array   # (Hp, Dop)
    b2p: jax.Array   # (1, Dop)
    d_in: int
    hidden: int
    d_out: int


def pack_mlp_weights(w1, b1, w2, b2):
    """Pad weights once at model-build time (hoisted out of the per-call path)."""
    D_in, H = w1.shape
    D_out = w2.shape[1]
    Dip = _round_up(D_in, 128)
    Hp = _round_up(H, 128)
    Dop = _round_up(D_out, 128)
    w1p = jnp.pad(w1, ((0, Dip - D_in), (0, Hp - H)))
    b1p = jnp.pad(b1, (0, Hp - H)).reshape(1, Hp)
    w2p = jnp.pad(w2, ((0, Hp - H), (0, Dop - D_out)))
    b2p = jnp.pad(b2, (0, Dop - D_out)).reshape(1, Dop)
    return PackedMLP(w1p, b1p, w2p, b2p, D_in, H, D_out)


def swag_forward(x, packed: PackedMLP, mxu_dtype="auto"):
    """SWAG.forward == base_model.forward for the MLP base model."""
    B, D_in = x.shape
    assert D_in == packed.d_in
    Dip, Hp = packed.w1p.shape
    Dop = packed.w2p.shape[1]
    Bp = _round_up(B, 8)

    # Activation padding is per-call by nature (batch/feature are data dims);
    # zero padding is exact (zero inputs x zero weights + zero bias) and a
    # lane-dense output avoids masked vst.msk partial stores.
    xp = jnp.pad(x, ((0, Bp - B), (0, Dip - D_in)))

    # bf16 MXU inputs at real sizes (2x MXU rate on v6e, mandatory on v7x);
    # keep f32 at toy sizes so the exactness check below holds.
    if isinstance(mxu_dtype, str) and mxu_dtype == "auto":
        mxu_dtype = jnp.bfloat16 if max(Dip, Hp, Dop) >= 512 else None

    def full(shape):
        return pl.BlockSpec(shape, lambda i: (0,) * len(shape))

    work_bytes = (xp.size + packed.w1p.size + packed.b1p.size
                  + packed.w2p.size + packed.b2p.size + Bp * Dop) * 4
    vmem_limit = int(min(max(4 * work_bytes, 2 * 1024 * 1024),
                         _vmem_budget_bytes()))

    kernel = functools.partial(_mlp_forward_kernel, mxu_dtype=mxu_dtype)

    # TODO(synk): at real base-model sizes replace grid=(1,) full-array blocks
    # with an (M//tm, N//tn, K//tk) grid + f32 VMEM accumulator and
    # dimension_semantics=("parallel","parallel","arbitrary"); and batch many
    # SWAG samples together so the MXU sees M >= 128 rows.
    out = pl.pallas_call(
        kernel,
        out_shape=jax.ShapeDtypeStruct((Bp, Dop), x.dtype),
        grid=(1,),
        in_specs=[
            full((Bp, Dip)),
            full((Dip, Hp)),
            full((1, Hp)),
            full((Hp, Dop)),
            full((1, Dop)),
        ],
        out_specs=full((Bp, Dop)),
        compiler_params=pltpu.CompilerParams(vmem_limit_bytes=vmem_limit),
    )(xp, packed.w1p, packed.b1p, packed.w2p, packed.b2p)
    return out[:B, :packed.d_out]


# ----------------------------------------------------------------------------
# Kernel 2: SWAG.sample() weight-space compute (exactly as in the spec):
#   variance = clamp(sq_mean - mean^2, var_clamp)
#   z        = cov_factor.T @ eps_low_rank        (K-step VPU broadcast FMA)
#   z       += variance * diag_noise              (if diag_noise)
#   z       *= sqrt(scale)
#   sample   = mean + z
# ----------------------------------------------------------------------------
_SAMPLE_LANES = 1024        # lanes per tile (multiple of 128)
_MAX_TILE_ROWS = 256        # sublane cap per tile
_SAMPLE_VMEM_TARGET = 16 * 1024 * 1024   # double-buffered working-set target


def _swag_sample_kernel(eps_ref, mean_ref, sq_mean_ref, cov_ref, noise_ref,
                        out_ref, *, var_clamp, sqrt_scale, diag_noise, rank):
    mean = mean_ref[...]                              # (ROWS, LANES) f32

    # Low-rank term: sum_k eps[k] * cov_factor[k].  rank is small (~8-20), so
    # an unrolled broadcast multiply-add on the VPU beats an M=1 MXU matmul;
    # eps scalars come from SMEM.  cov is stored bf16 (HBM traffic) and cast
    # to f32 for the accumulation (VPU compute stays f32).
    z = eps_ref[0] * cov_ref[0].astype(jnp.float32)
    for k in range(1, rank):
        z = z + eps_ref[k] * cov_ref[k].astype(jnp.float32)

    if diag_noise:
        # Keep the cancellation-prone variance computation in f32.
        var = jnp.maximum(sq_mean_ref[...] - mean * mean, var_clamp)
        z = z + var * noise_ref[...]

    out_ref[...] = (mean + z * sqrt_scale).astype(out_ref.dtype)


class SwagSampleState(NamedTuple):
    """SWAG buffers kept resident in the padded, kernel-ready layout."""
    mean2: jax.Array     # (total_rows, LANES) f32
    sq_mean2: jax.Array  # (total_rows, LANES) f32
    cov4: jax.Array      # (n_tiles, K, rows_per_tile, LANES) cov_dtype
    num_params: int
    rows_per_tile: int
    n_tiles: int

    @property
    def total_rows(self):
        return self.n_tiles * self.rows_per_tile

    @property
    def rank(self):
        return self.cov4.shape[1]


def _choose_rows_per_tile(K, cov_itemsize, num_params):
    # Per-sublane-row bytes across all streams (mean, sq_mean, noise, out f32
    # + K cov rows), double-buffered, must stay <= _SAMPLE_VMEM_TARGET.
    row_bytes = _SAMPLE_LANES * (4 * 4 + K * cov_itemsize)
    rows = _SAMPLE_VMEM_TARGET // (2 * row_bytes)
    rows = max(8, min(_MAX_TILE_ROWS, (rows // 8) * 8))
    rows_needed = _round_up(-(-num_params // _SAMPLE_LANES), 8)
    return max(8, min(rows, rows_needed))


def pack_swag_state(mean, sq_mean, cov_factor, *, cov_dtype=jnp.bfloat16,
                    rows_per_tile=None):
    """Pad/reshape SWAG buffers once (at fit() time) into the resident layout.

    mean, sq_mean : [P] f32     cov_factor : [K, P] f32
    """
    P = int(mean.shape[0])
    K = int(cov_factor.shape[0])
    cov_itemsize = jnp.dtype(cov_dtype).itemsize

    if rows_per_tile is None:
        rows_per_tile = _choose_rows_per_tile(K, cov_itemsize, P)
    assert rows_per_tile % 8 == 0

    rows_needed = -(-P // _SAMPLE_LANES)
    n_tiles = max(1, -(-rows_needed // rows_per_tile))
    total_rows = n_tiles * rows_per_tile
    P_pad = total_rows * _SAMPLE_LANES

    def to2d(v):
        return jnp.pad(v, (0, P_pad - P)).reshape(total_rows, _SAMPLE_LANES)

    mean2 = to2d(mean).astype(jnp.float32)
    sqm2 = to2d(sq_mean).astype(jnp.float32)
    # Per-tile-contiguous cov slab: (n_tiles, K, rows, LANES) so each grid step
    # DMAs one contiguous block instead of K strided chunks.
    cov4 = (jnp.pad(cov_factor, ((0, 0), (0, P_pad - P)))
            .reshape(K, n_tiles, rows_per_tile, _SAMPLE_LANES)
            .transpose(1, 0, 2, 3)
            .astype(cov_dtype))
    return SwagSampleState(mean2, sqm2, cov4, P, rows_per_tile, n_tiles)


def swag_sample_packed(state: SwagSampleState, eps_low_rank, diag_noise2,
                       *, scale=0.5, diag_noise=True, var_clamp=1e-6):
    """Run SWAG.sample()'s weight-space compute on the resident packed layout.

    eps_low_rank : [K] f32
    diag_noise2  : [total_rows, LANES] f32   (fresh per sample, generated in
                                              the padded layout — no pad op)
    Returns the sampled weights in the padded (total_rows, LANES) layout; use
    unpack_flat() only where a flat [P] view is required.
    """
    K = state.rank
    rows = state.rows_per_tile
    n_tiles = state.n_tiles
    cov_itemsize = state.cov4.dtype.itemsize

    vec_spec = pl.BlockSpec((rows, _SAMPLE_LANES), lambda i: (i, 0))
    cov_spec = pl.BlockSpec((None, K, rows, _SAMPLE_LANES),
                            lambda i: (i, 0, 0, 0))

    kernel = functools.partial(
        _swag_sample_kernel,
        var_clamp=float(var_clamp),
        sqrt_scale=float(scale) ** 0.5,
        diag_noise=bool(diag_noise),
        rank=K,
    )

    # Per-step payload: 3 f32 inputs + 1 f32 output + K cov rows (bf16/f32).
    step_bytes = _SAMPLE_LANES * rows * (4 * 4 + K * cov_itemsize)
    vmem_limit = int(min(max(3 * step_bytes, 4 * 1024 * 1024),
                         _vmem_budget_bytes()))

    return pl.pallas_call(
        kernel,
        out_shape=jax.ShapeDtypeStruct((state.total_rows, _SAMPLE_LANES),
                                       jnp.float32),
        grid=(n_tiles,),
        in_specs=[
            pl.BlockSpec(memory_space=pltpu.MemorySpace.SMEM),  # eps_low_rank
            vec_spec,     # mean
            vec_spec,     # sq_mean
            cov_spec,     # cov_factor (per-tile contiguous slab)
            vec_spec,     # diag noise
        ],
        out_specs=vec_spec,
        compiler_params=pltpu.CompilerParams(
            dimension_semantics=("parallel",),
            vmem_limit_bytes=vmem_limit),
    )(eps_low_rank, state.mean2, state.sq_mean2, state.cov4, diag_noise2)


def unpack_flat(out2, num_params):
    """Flat [P] view of a padded sample (only where interop needs it)."""
    return out2.reshape(-1)[:num_params]


# ----------------------------------------------------------------------------
# Pure-JAX references (for correctness checking).
# ----------------------------------------------------------------------------
def _forward_ref(x, w1, b1, w2, b2):
    h = jnp.maximum(x @ w1 + b1, 0.0)
    return h @ w2 + b2


def _sample_ref(mean, sq_mean, cov_factor, eps, noise,
                scale=0.5, diag_noise=True, var_clamp=1e-6):
    var = jnp.maximum(sq_mean - mean ** 2, var_clamp)
    # Elementwise-sum form (matches the kernel's VPU FMA; avoids TPU matmul
    # default-precision rounding in the reference itself).
    z = jnp.sum(cov_factor * eps[:, None], axis=0)
    if diag_noise:
        z = z + var * noise
    z = z * (scale ** 0.5)
    return mean + z


# ----------------------------------------------------------------------------
if __name__ == "__main__":
    key = jax.random.PRNGKey(0)
    kx, kw1, kb1, kw2, kb2, kcov, keps, knoise, ksq = jax.random.split(key, 9)

    # Small shapes consistent with an MLP base model.
    B, D_IN, H, D_OUT = 2, 32, 64, 16
    RANK = 8  # low-rank subspace size

    # Deterministic synthetic "base model" parameters.
    x = jax.random.normal(kx, (B, D_IN), dtype=jnp.float32)
    w1 = jax.random.normal(kw1, (D_IN, H), dtype=jnp.float32) * 0.1
    b1 = jax.random.normal(kb1, (H,), dtype=jnp.float32) * 0.1
    w2 = jax.random.normal(kw2, (H, D_OUT), dtype=jnp.float32) * 0.1
    b2 = jax.random.normal(kb2, (D_OUT,), dtype=jnp.float32) * 0.1

    # ---- SWAG.forward == base_model.forward ----
    packed_mlp = pack_mlp_weights(w1, b1, w2, b2)   # padded once, kept resident
    y = swag_forward(x, packed_mlp)
    jax.block_until_ready(y)
    y_ref = _forward_ref(x, w1, b1, w2, b2)
    assert y.shape == (B, D_OUT)
    assert jnp.allclose(y, y_ref, atol=1e-4, rtol=1e-4), "forward mismatch"

    # ---- SWAG buffers (mean / sq_mean over num_parameters) ----
    flat_params = jnp.concatenate(
        [w1.reshape(-1), b1.reshape(-1), w2.reshape(-1), b2.reshape(-1)]
    )
    P = flat_params.shape[0]  # 32*64 + 64 + 64*16 + 16 = 3152

    mean = flat_params
    # Ensure sq_mean >= mean^2 so variance is non-trivially positive.
    sq_mean = mean ** 2 + jnp.abs(jax.random.normal(ksq, (P,), jnp.float32)) * 0.01
    # Pre-round cov to bf16-representable values so the resident-bf16 kernel
    # path and the f32 reference agree exactly.
    cov_factor = (jax.random.normal(kcov, (RANK, P), dtype=jnp.float32) * 0.05
                  ).astype(jnp.bfloat16).astype(jnp.float32)
    eps_low_rank = jax.random.normal(keps, (RANK,), dtype=jnp.float32)

    # ---- SWAG.sample() weight-space compute (packed/resident layout) ----
    state = pack_swag_state(mean, sq_mean, cov_factor, cov_dtype=jnp.bfloat16)
    noise2 = jax.random.normal(
        knoise, (state.total_rows, _SAMPLE_LANES), dtype=jnp.float32)
    out2 = swag_sample_packed(state, eps_low_rank, noise2,
                              scale=0.5, diag_noise=True, var_clamp=1e-6)
    jax.block_until_ready(out2)
    sample = unpack_flat(out2, P)
    noise_flat = noise2.reshape(-1)[:P]
    sample_ref = _sample_ref(mean, sq_mean, cov_factor, eps_low_rank, noise_flat)
    assert sample.shape == (P,)
    assert jnp.allclose(sample, sample_ref, atol=1e-4, rtol=1e-4), "sample mismatch"

    # ---- Bigger sample() test: exercises multi-tile streaming + large tiles ----
    kb = jax.random.PRNGKey(1)
    kbm, kbs, kbc, kbe, kbn = jax.random.split(kb, 5)
    P_BIG, K_BIG = 300_000, 8
    mean_b = jax.random.normal(kbm, (P_BIG,), jnp.float32) * 0.5
    sq_mean_b = mean_b ** 2 + jnp.abs(
        jax.random.normal(kbs, (P_BIG,), jnp.float32)) * 0.01
    cov_b = (jax.random.normal(kbc, (K_BIG, P_BIG), jnp.float32) * 0.05
             ).astype(jnp.bfloat16).astype(jnp.float32)
    eps_b = jax.random.normal(kbe, (K_BIG,), jnp.float32)

    state_b = pack_swag_state(mean_b, sq_mean_b, cov_b, cov_dtype=jnp.bfloat16)
    assert state_b.n_tiles >= 2, "expected multi-tile grid for the big test"
    noise2_b = jax.random.normal(
        kbn, (state_b.total_rows, _SAMPLE_LANES), dtype=jnp.float32)
    out2_b = swag_sample_packed(state_b, eps_b, noise2_b,
                                scale=0.5, diag_noise=True, var_clamp=1e-6)
    jax.block_until_ready(out2_b)
    sample_b = unpack_flat(out2_b, P_BIG)
    ref_b = _sample_ref(mean_b, sq_mean_b, cov_b, eps_b,
                        noise2_b.reshape(-1)[:P_BIG])
    assert jnp.allclose(sample_b, ref_b, atol=1e-4, rtol=1e-4), "big sample mismatch"

    # TODO(synk): collect_model / set_swa / fit are in-place running-average /
    # subspace bookkeeping with no kernel-worthy hot path; left to host JAX.

    print("KERNEL_OK")
</pallas_src>

<mosaic_0001>
module attributes {stable_mosaic.version = 11 : i64} {
  func.func @_mlp_forward_kernel(%arg0: i32, %arg1: memref<8x128xf32, #tpu.memory_space<vmem>>, %arg2: memref<128x128xf32, #tpu.memory_space<vmem>>, %arg3: memref<1x128xf32, #tpu.memory_space<vmem>>, %arg4: memref<128x128xf32, #tpu.memory_space<vmem>>, %arg5: memref<1x128xf32, #tpu.memory_space<vmem>>, %arg6: memref<8x128xf32, #tpu.memory_space<vmem>>) attributes {dimension_semantics = [#tpu.dimension_semantics<arbitrary>], iteration_bounds = array<i64: 1>, scalar_prefetch = 0 : i64, scratch_operands = 0 : i64, tpu.core_type = #tpu.core_type<tc>, window_params = [{pipeline_mode = #tpu.pipeline_mode<synchronous>, transform_indices = @transform_0, window_bounds = array<i64: 8, 128>}, {pipeline_mode = #tpu.pipeline_mode<synchronous>, transform_indices = @transform_1, window_bounds = array<i64: 128, 128>}, {pipeline_mode = #tpu.pipeline_mode<synchronous>, transform_indices = @transform_2, window_bounds = array<i64: 1, 128>}, {pipeline_mode = #tpu.pipeline_mode<synchronous>, transform_indices = @transform_3, window_bounds = array<i64: 128, 128>}, {pipeline_mode = #tpu.pipeline_mode<synchronous>, transform_indices = @transform_4, window_bounds = array<i64: 1, 128>}, {pipeline_mode = #tpu.pipeline_mode<synchronous>, transform_indices = @transform_5, window_bounds = array<i64: 8, 128>}]} {
    %c0 = arith.constant 0 : index
    %c0_0 = arith.constant 0 : index
    %0 = vector.load %arg1[%c0, %c0_0] : memref<8x128xf32, #tpu.memory_space<vmem>>, vector<8x128xf32>
    %c0_1 = arith.constant 0 : index
    %c0_2 = arith.constant 0 : index
    %1 = vector.load %arg2[%c0_1, %c0_2] : memref<128x128xf32, #tpu.memory_space<vmem>>, vector<128x128xf32>
    %cst = arith.constant dense<0.000000e+00> : vector<8x128xf32>
    %2 = tpu.matmul %0, %1, %cst {dimension_numbers = #tpu.dot_dimension_numbers<[1], [0], [0], [1], [0, 0, 1, 1], [], []>} : vector<8x128xf32>, vector<128x128xf32>, vector<8x128xf32> -> vector<8x128xf32>
    %c0_3 = arith.constant 0 : index
    %c0_4 = arith.constant 0 : index
    %3 = vector.load %arg3[%c0_3, %c0_4] : memref<1x128xf32, #tpu.memory_space<vmem>>, vector<1x128xf32>
    %4 = vector.broadcast %3 : vector<1x128xf32> to vector<8x128xf32>
    %5 = arith.addf %2, %4 : vector<8x128xf32>
    %cst_5 = arith.constant 0.000000e+00 : f32
    %6 = vector.broadcast %cst_5 : f32 to vector<8x128xf32>
    %7 = arith.maximumf %5, %6 : vector<8x128xf32>
    %c0_6 = arith.constant 0 : index
    %c0_7 = arith.constant 0 : index
    %8 = vector.load %arg4[%c0_6, %c0_7] : memref<128x128xf32, #tpu.memory_space<vmem>>, vector<128x128xf32>
    %cst_8 = arith.constant dense<0.000000e+00> : vector<8x128xf32>
    %9 = tpu.matmul %7, %8, %cst_8 {dimension_numbers = #tpu.dot_dimension_numbers<[1], [0], [0], [1], [0, 0, 1, 1], [], []>} : vector<8x128xf32>, vector<128x128xf32>, vector<8x128xf32> -> vector<8x128xf32>
    %c0_9 = arith.constant 0 : index
    %c0_10 = arith.constant 0 : index
    %10 = vector.load %arg5[%c0_9, %c0_10] : memref<1x128xf32, #tpu.memory_space<vmem>>, vector<1x128xf32>
    %11 = vector.broadcast %10 : vector<1x128xf32> to vector<8x128xf32>
    %12 = arith.addf %9, %11 : vector<8x128xf32>
    %c0_11 = arith.constant 0 : index
    %c0_12 = arith.constant 0 : index
    %13 = vector.load %arg6[%c0_11, %c0_12] : memref<8x128xf32, #tpu.memory_space<vmem>>, vector<8x128xf32>
    tpu.vector_store %arg6[%c0_11, %c0_12], %12 {strides = array<i32>} : memref<8x128xf32, #tpu.memory_space<vmem>>, vector<8x128xf32>,
    return
  }
  func.func @transform_0(%arg0: i32) -> (i32, i32) {
    %c0_i32 = arith.constant 0 : i32
    %c0_i32_0 = arith.constant 0 : i32
    %c0_i32_1 = arith.constant 0 : i32
    return %c0_i32, %c0_i32_0 : i32, i32
  }
  func.func @transform_1(%arg0: i32) -> (i32, i32) {
    %c0_i32 = arith.constant 0 : i32
    %c0_i32_0 = arith.constant 0 : i32
    %c0_i32_1 = arith.constant 0 : i32
    return %c0_i32, %c0_i32_0 : i32, i32
  }
  func.func @transform_2(%arg0: i32) -> (i32, i32) {
    %c0_i32 = arith.constant 0 : i32
    %c0_i32_0 = arith.constant 0 : i32
    %c0_i32_1 = arith.constant 0 : i32
    return %c0_i32, %c0_i32_0 : i32, i32
  }
  func.func @transform_3(%arg0: i32) -> (i32, i32) {
    %c0_i32 = arith.constant 0 : i32
    %c0_i32_0 = arith.constant 0 : i32
    %c0_i32_1 = arith.constant 0 : i32
    return %c0_i32, %c0_i32_0 : i32, i32
  }
  func.func @transform_4(%arg0: i32) -> (i32, i32) {
    %c0_i32 = arith.constant 0 : i32
    %c0_i32_0 = arith.constant 0 : i32
    %c0_i32_1 = arith.constant 0 : i32
    return %c0_i32, %c0_i32_0 : i32, i32
  }
  func.func @transform_5(%arg0: i32) -> (i32, i32) {
    %c0_i32 = arith.constant 0 : i32
    %c0_i32_0 = arith.constant 0 : i32
    %c0_i32_1 = arith.constant 0 : i32
    return %c0_i32, %c0_i32_0 : i32, i32
  }
}

</mosaic_0001>

<llo_original>
// kernel: tpu_custom_call.1
$region0: #{tpu_custom_call.1}
  #allocation0 [shape = 'u32[]', space=smem, size = 0x4, offset = 0x4, fixed_abs, tag = 'smem constant byte address 0x4 - core index']
  #allocation1 [shape = 'u32[144,128]{1,0:T(1,128)}', space=vmem, size = 0x12000, scoped, tag = 'internal scratch']
  %s0 = inlined_call_operand.hbm [shape: f32[8,128], index: 0, kind: input, shape index: {}]
  %s1 = inlined_call_operand.hbm [shape: f32[128,128], index: 1, kind: input, shape index: {}]
  %s2 = inlined_call_operand.vmem [shape: f32[1,128], index: 2, kind: input, shape index: {}]
  %s3 = inlined_call_operand.hbm [shape: f32[128,128], index: 3, kind: input, shape index: {}]
  %s4 = inlined_call_operand.vmem [shape: f32[1,128], index: 4, kind: input, shape index: {}]
  %s5 = inlined_call_operand.hbm [shape: f32[8,128], index: 5, kind: output, shape index: {}]
  %s6 = sld [smem:[#allocation0]]
  $region42: #{tpu_custom_call.1} parent=0
    _
  %s8 = ssub.s32 1, %s6
  %s9 = scalar_select 0, %s8, %s6
  $region1: #{tpu_custom_call.1} parent=0
    #allocation2 [shape = 'u8[4096]{0}', space=vmem, size = 0x1000, scoped, tag = 'input window, operand 0, single buffered']
    #allocation3 [shape = 's32[1]{0}', space=sflag, size = 0x4, scoped, tag = 'scoped memory for tpu_custom_call.1']
    #allocation4 [shape = 's32[1]{0}', space=sflag, size = 0x4, scoped, tag = 'scoped memory for tpu_custom_call.1']
    #allocation5 [shape = 'u8[65536]{0}', space=vmem, size = 0x10000, scoped, tag = 'input window, operand 1, single buffered']
    #allocation6 [shape = 's32[1]{0}', space=sflag, size = 0x4, scoped, tag = 'scoped memory for tpu_custom_call.1']
    #allocation7 [shape = 'u8[65536]{0}', space=vmem, size = 0x10000, scoped, tag = 'input window, operand 3, single buffered']
    #allocation8 [shape = 'u8[4096]{0}', space=vmem, size = 0x1000, scoped, tag = 'output window, operand 0, single buffered']
    %10 = vsyncpa [#allocation3], 0
    %11 = vsyncpa [#allocation6], 0
    %12 = vsyncpa [#allocation4], 0
    // Predicated region
    $region2: #{tpu_custom_call.1} parent=1 // pred_check
      _
    $region3: #{tpu_custom_call.1} parent=1 // pred_check_branch
      %14 = sbr.rel (0) target = $region5
    $region4: #{tpu_custom_call.1} parent=1 // pred_region
      %s16 = ssub.s32 128, 128
      %17 = vsyncadd [#allocation3], %s16
      %s19 = sshll.u32 [#allocation2], 4
      %s20 = int_to_ptr.vmem [resolvable:$true] %s19
      %22 = dma.hbm_to_vmem [thread:$0]  %s0, 128, %s20, [#allocation3]
    $region5: #{tpu_custom_call.1} parent=1 // pred_fallthru
      _
    // Predicated region
    $region6: #{tpu_custom_call.1} parent=1 // pred_check
      _
    $region7: #{tpu_custom_call.1} parent=1 // pred_check_branch
      %24 = sbr.rel (0) target = $region9
    $region8: #{tpu_custom_call.1} parent=1 // pred_region
      %s26 = ssub.s32 2048, 2048
      %27 = vsyncadd [#allocation6], %s26
      %s28 = sshll.u32 [#allocation5], 4
      %s29 = int_to_ptr.vmem [resolvable:$true] %s28
      %34 = dma.hbm_to_vmem [thread:$0]  %s1, 2048, %s29, [#allocation6], 128, 128, 8
    $region9: #{tpu_custom_call.1} parent=1 // pred_fallthru
      _
    // Predicated region
    $region10: #{tpu_custom_call.1} parent=1 // pred_check
      _
    $region11: #{tpu_custom_call.1} parent=1 // pred_check_branch
      %36 = sbr.rel (0) target = $region13
    $region12: #{tpu_custom_call.1} parent=1 // pred_region
      _
    $region13: #{tpu_custom_call.1} parent=1 // pred_fallthru
      _
    // Predicated region
    $region14: #{tpu_custom_call.1} parent=1 // pred_check
      _
    $region15: #{tpu_custom_call.1} parent=1 // pred_check_branch
      %38 = sbr.rel (0) target = $region17
    $region16: #{tpu_custom_call.1} parent=1 // pred_region
      %s40 = ssub.s32 2048, 2048
      %41 = vsyncadd [#allocation6], %s40
      %s42 = sshll.u32 [#allocation7], 4
      %s43 = int_to_ptr.vmem [resolvable:$true] %s42
      %48 = dma.hbm_to_vmem [thread:$0]  %s3, 2048, %s43, [#allocation6], 128, 128, 8
    $region17: #{tpu_custom_call.1} parent=1 // pred_fallthru
      _
    // Predicated region
    $region18: #{tpu_custom_call.1} parent=1 // pred_check
      _
    $region19: #{tpu_custom_call.1} parent=1 // pred_check_branch
      %50 = sbr.rel (0) target = $region21
    $region20: #{tpu_custom_call.1} parent=1 // pred_region
      _
    $region21: #{tpu_custom_call.1} parent=1 // pred_fallthru
      _
    // Predicated region
    $region22: #{tpu_custom_call.1} parent=1 // pred_check
      _
    $region23: #{tpu_custom_call.1} parent=1 // pred_check_branch
      %52 = sbr.rel (0) target = $region25
    $region24: #{tpu_custom_call.1} parent=1 // pred_region
      %53 = dma.done [#allocation3], 128
    $region25: #{tpu_custom_call.1} parent=1 // pred_fallthru
      _
    // Predicated region
    $region26: #{tpu_custom_call.1} parent=1 // pred_check
      _
    $region27: #{tpu_custom_call.1} parent=1 // pred_check_branch
      %55 = sbr.rel (0) target = $region29
    $region28: #{tpu_custom_call.1} parent=1 // pred_region
      %56 = dma.done [#allocation6], 2048
    $region29: #{tpu_custom_call.1} parent=1 // pred_fallthru
      _
    // Predicated region
    $region30: #{tpu_custom_call.1} parent=1 // pred_check
      _
    $region31: #{tpu_custom_call.1} parent=1 // pred_check_branch
      %58 = sbr.rel (0) target = $region33
    $region32: #{tpu_custom_call.1} parent=1 // pred_region
      %59 = dma.done [#allocation6], 2048
    $region33: #{tpu_custom_call.1} parent=1 // pred_fallthru
      _
    %v60 = vld [vmem:[#allocation2] sm:$0xff]
    %v61 = vld [vmem:[#allocation5] sm:$0xff]
    %v62 = vld [vmem:[#allocation5 + $0x8] sm:$0xff]
    %v63 = vld [vmem:[#allocation5 + $0x10] sm:$0xff]
    %v64 = vld [vmem:[#allocation5 + $0x18] sm:$0xff]
    %v65 = vld [vmem:[#allocation5 + $0x20] sm:$0xff]
    %v66 = vld [vmem:[#allocation5 + $0x28] sm:$0xff]
    %v67 = vld [vmem:[#allocation5 + $0x30] sm:$0xff]
    %v68 = vld [vmem:[#allocation5 + $0x38] sm:$0xff]
    %v69 = vld [vmem:[#allocation5 + $0x40] sm:$0xff]
    %v70 = vld [vmem:[#allocation5 + $0x48] sm:$0xff]
    %v71 = vld [vmem:[#allocation5 + $0x50] sm:$0xff]
    %v72 = vld [vmem:[#allocation5 + $0x58] sm:$0xff]
    %v73 = vld [vmem:[#allocation5 + $0x60] sm:$0xff]
    %v74 = vld [vmem:[#allocation5 + $0x68] sm:$0xff]
    %v75 = vld [vmem:[#allocation5 + $0x70] sm:$0xff]
    %v76 = vld [vmem:[#allocation5 + $0x78] sm:$0xff]
    %v77 = vld [vmem:[%s2] sm:$0x1]
    %v79 = vlaneseq
    %v80 = vshrl.u32 %v79, 7
    %v81 = vsub.s32 0, %v80
    %v82 = vrot.slane %v77, %v81
    %84 = vmatprep.subr.mxu0 0.0
    %85 = vmatpush1.msra.mxu0 %v76
    %86 = vmatprep.subr.mxu0 0.0
    %87 = vmatpush1.msra.mxu0 %v75
    %88 = vmatprep.subr.mxu0 0.0
    %89 = vmatpush1.msra.mxu0 %v74
    %90 = vmatprep.subr.mxu0 0.0
    %91 = vmatpush1.msra.mxu0 %v73
    %92 = vmatprep.subr.mxu0 0.0
    %93 = vmatpush1.msra.mxu0 %v72
    %94 = vmatprep.subr.mxu0 0.0
    %95 = vmatpush1.msra.mxu0 %v71
    %96 = vmatprep.subr.mxu0 0.0
    %97 = vmatpush1.msra.mxu0 %v70
    %98 = vmatprep.subr.mxu0 0.0
    %99 = vmatpush1.msra.mxu0 %v69
    %100 = vmatprep.subr.mxu0 0.0
    %101 = vmatpush1.msra.mxu0 %v68
    %102 = vmatprep.subr.mxu0 0.0
    %103 = vmatpush1.msra.mxu0 %v67
    %104 = vmatprep.subr.mxu0 0.0
    %105 = vmatpush1.msra.mxu0 %v66
    %106 = vmatprep.subr.mxu0 0.0
    %107 = vmatpush1.msra.mxu0 %v65
    %108 = vmatprep.subr.mxu0 0.0
    %109 = vmatpush1.msra.mxu0 %v64
    %110 = vmatprep.subr.mxu0 0.0
    %111 = vmatpush1.msra.mxu0 %v63
    %112 = vmatprep.subr.mxu0 0.0
    %113 = vmatpush1.msra.mxu0 %v62
    %114 = vmatprep.subr.mxu0 0.0
    %115 = vmatpush1.msra.mxu0 %v61
    %116 = vmatprep.subr.mxu0 0.0
    %117 = vmatpush2.msra.mxu0 0.0
    %118 = vmatprep.subr.mxu0 0.0
    %119 = vmatpush2.msra.mxu0 0.0
    %120 = vmatprep.subr.mxu0 0.0
    %121 = vmatpush2.msra.mxu0 0.0
    %122 = vmatprep.subr.mxu0 0.0
    %123 = vmatpush2.msra.mxu0 0.0
    %124 = vmatprep.subr.mxu0 0.0
    %125 = vmatpush2.msra.mxu0 0.0
    %126 = vmatprep.subr.mxu0 0.0
    %127 = vmatpush2.msra.mxu0 0.0
    %128 = vmatprep.subr.mxu0 0.0
    %129 = vmatpush2.msra.mxu0 0.0
    %130 = vmatprep.subr.mxu0 0.0
    %131 = vmatpush2.msra.mxu0 0.0
    %132 = vmatprep.subr.mxu0 0.0
    %133 = vmatpush2.msra.mxu0 0.0
    %134 = vmatprep.subr.mxu0 0.0
    %135 = vmatpush2.msra.mxu0 0.0
    %136 = vmatprep.subr.mxu0 0.0
    %137 = vmatpush2.msra.mxu0 0.0
    %138 = vmatprep.subr.mxu0 0.0
    %139 = vmatpush2.msra.mxu0 0.0
    %140 = vmatprep.subr.mxu0 0.0
    %141 = vmatpush2.msra.mxu0 0.0
    %142 = vmatprep.subr.mxu0 0.0
    %143 = vmatpush2.msra.mxu0 0.0
    %144 = vmatprep.subr.mxu0 0.0
    %145 = vmatpush2.msra.mxu0 0.0
    %146 = vmatprep.subr.mxu0 0.0
    %147 = vmatpush2.msra.mxu0 0.0
    %148 = vmatprep.mubr.f32.mxu0 0.0
    %149 = vmatmul.mubr.f32.gmra.mxu0 %v60
    %v150 = vpop.f32.mrf.mxu0
    %v151 = vadd.f32 %v82, %v150
    %v152 = vpop.f32.mrf.mxu0
    %153 = vdwg.mxu0
    %v154 = vmax.f32 %v151, 0.0
    %v155 = vld [vmem:[#allocation7] sm:$0xff]
    %v156 = vld [vmem:[#allocation7 + $0x8] sm:$0xff]
    %v157 = vld [vmem:[#allocation7 + $0x10] sm:$0xff]
    %v158 = vld [vmem:[#allocation7 + $0x18] sm:$0xff]
    %v159 = vld [vmem:[#allocation7 + $0x20] sm:$0xff]
    %v160 = vld [vmem:[#allocation7 + $0x28] sm:$0xff]
    %v161 = vld [vmem:[#allocation7 + $0x30] sm:$0xff]
    %v162 = vld [vmem:[#allocation7 + $0x38] sm:$0xff]
    %v163 = vld [vmem:[#allocation7 + $0x40] sm:$0xff]
    %v164 = vld [vmem:[#allocation7 + $0x48] sm:$0xff]
    %v165 = vld [vmem:[#allocation7 + $0x50] sm:$0xff]
    %v166 = vld [vmem:[#allocation7 + $0x58] sm:$0xff]
    %v167 = vld [vmem:[#allocation7 + $0x60] sm:$0xff]
    %v168 = vld [vmem:[#allocation7 + $0x68] sm:$0xff]
    %v169 = vld [vmem:[#allocation7 + $0x70] sm:$0xff]
    %v170 = vld [vmem:[#allocation7 + $0x78] sm:$0xff]
    %v171 = vld [vmem:[%s4] sm:$0x1]
    %v173 = vlaneseq
    %v174 = vshrl.u32 %v173, 7
    %v175 = vsub.s32 0, %v174
    %v176 = vrot.slane %v171, %v175
    %178 = vmatprep.subr.mxu0 0.0
    %179 = vmatpush1.msra.mxu0 %v170
    %180 = vmatprep.subr.mxu0 0.0
    %181 = vmatpush1.msra.mxu0 %v169
    %182 = vmatprep.subr.mxu0 0.0
    %183 = vmatpush1.msra.mxu0 %v168
    %184 = vmatprep.subr.mxu0 0.0
    %185 = vmatpush1.msra.mxu0 %v167
    %186 = vmatprep.subr.mxu0 0.0
    %187 = vmatpush1.msra.mxu0 %v166
    %188 = vmatprep.subr.mxu0 0.0
    %189 = vmatpush1.msra.mxu0 %v165
    %190 = vmatprep.subr.mxu0 0.0
    %191 = vmatpush1.msra.mxu0 %v164
    %192 = vmatprep.subr.mxu0 0.0
    %193 = vmatpush1.msra.mxu0 %v163
    %194 = vmatprep.subr.mxu0 0.0
    %195 = vmatpush1.msra.mxu0 %v162
    %196 = vmatprep.subr.mxu0 0.0
    %197 = vmatpush1.msra.mxu0 %v161
    %198 = vmatprep.subr.mxu0 0.0
    %199 = vmatpush1.msra.mxu0 %v160
    %200 = vmatprep.subr.mxu0 0.0
    %201 = vmatpush1.msra.mxu0 %v159
    %202 = vmatprep.subr.mxu0 0.0
    %203 = vmatpush1.msra.mxu0 %v158
    %204 = vmatprep.subr.mxu0 0.0
    %205 = vmatpush1.msra.mxu0 %v157
    %206 = vmatprep.subr.mxu0 0.0
    %207 = vmatpush1.msra.mxu0 %v156
    %208 = vmatprep.subr.mxu0 0.0
    %209 = vmatpush1.msra.mxu0 %v155
    %210 = vmatprep.subr.mxu0 0.0
    %211 = vmatpush2.msra.mxu0 0.0
    %212 = vmatprep.subr.mxu0 0.0
    %213 = vmatpush2.msra.mxu0 0.0
    %214 = vmatprep.subr.mxu0 0.0
    %215 = vmatpush2.msra.mxu0 0.0
    %216 = vmatprep.subr.mxu0 0.0
    %217 = vmatpush2.msra.mxu0 0.0
    %218 = vmatprep.subr.mxu0 0.0
    %219 = vmatpush2.msra.mxu0 0.0
    %220 = vmatprep.subr.mxu0 0.0
    %221 = vmatpush2.msra.mxu0 0.0
    %222 = vmatprep.subr.mxu0 0.0
    %223 = vmatpush2.msra.mxu0 0.0
    %224 = vmatprep.subr.mxu0 0.0
    %225 = vmatpush2.msra.mxu0 0.0
    %226 = vmatprep.subr.mxu0 0.0
    %227 = vmatpush2.msra.mxu0 0.0
    %228 = vmatprep.subr.mxu0 0.0
    %229 = vmatpush2.msra.mxu0 0.0
    %230 = vmatprep.subr.mxu0 0.0
    %231 = vmatpush2.msra.mxu0 0.0
    %232 = vmatprep.subr.mxu0 0.0
    %233 = vmatpush2.msra.mxu0 0.0
    %234 = vmatprep.subr.mxu0 0.0
    %235 = vmatpush2.msra.mxu0 0.0
    %236 = vmatprep.subr.mxu0 0.0
    %237 = vmatpush2.msra.mxu0 0.0
    %238 = vmatprep.subr.mxu0 0.0
    %239 = vmatpush2.msra.mxu0 0.0
    %240 = vmatprep.subr.mxu0 0.0
    %241 = vmatpush2.msra.mxu0 0.0
    %242 = vmatprep.mubr.f32.mxu0 0.0
    %243 = vmatmul.mubr.f32.gmra.mxu0 %v154
    %v244 = vpop.f32.mrf.mxu0
    %v245 = vadd.f32 %v176, %v244
    %v246 = vpop.f32.mrf.mxu0
    %247 = vdwg.mxu0
    %248 = vst [vmem:[#allocation8] sm:$0xff] %v245
    // Predicated region
    $region34: #{tpu_custom_call.1} parent=1 // pred_check
      _
    $region35: #{tpu_custom_call.1} parent=1 // pred_check_branch
      %250 = sbr.rel (0) target = $region37
    $region36: #{tpu_custom_call.1} parent=1 // pred_region
      %s252 = ssub.s32 128, 128
      %253 = vsyncadd [#allocation4], %s252
      %s255 = sshll.u32 [#allocation8], 4
      %s256 = int_to_ptr.vmem [resolvable:$true] %s255
      %258 = dma.vmem_to_hbm [thread:$0]  %s256, 128, %s5, [#allocation4]
    $region37: #{tpu_custom_call.1} parent=1 // pred_fallthru
      _
    // Predicated region
    $region38: #{tpu_custom_call.1} parent=1 // pred_check
      _
    $region39: #{tpu_custom_call.1} parent=1 // pred_check_branch
      %260 = sbr.rel (0) target = $region41
    $region40: #{tpu_custom_call.1} parent=1 // pred_region
      %261 = dma.done [#allocation4], 128
    $region41: #{tpu_custom_call.1} parent=1 // pred_fallthru
      _
    %262 = vsyncpa [#allocation3], 1
    %263 = vsyncpa [#allocation6], 1
    %264 = vsyncpa [#allocation4], 1

</llo_original>
